<compile_context>
chip_gen: v7x
topology: tpu7x:2x2x1
jax: 0.10.0
libtpu: 0.0.40
codegen_flags: <defaults>
</compile_context>

<pallas_src>
import functools

import jax
import jax.numpy as jnp
from jax.experimental import pallas as pl
from jax.experimental.pallas import tpu as pltpu


def _round_up(x, m):
    return ((x + m - 1) // m) * m


def _umap_loss_kernel(diff_ref, out_ref, *,
                      a, b, batch_size, repulsion_strength, n_total, tn, eps):
    i = pl.program_id(0)

    diff = diff_ref[...].astype(jnp.float32)                  # (D, tn) f32
    d2 = jnp.sum(diff * diff, axis=0, keepdims=True)          # (1, tn)

    # distance ** (2*b) == (d2) ** b  (distance >= 0).  Exactly 0 at d2 == 0,
    # matching torch pow semantics for 0 ** positive.
    d_pow = jnp.exp(b * jnp.log(jnp.maximum(d2, 1e-30)))
    d_pow = jnp.where(d2 > 0.0, d_pow, 0.0)
    p_dist = 1.0 / (1.0 + a * d_pow)                          # (1, tn), <= 1

    # Column index -> positive pair (< batch_size) / negative / padding.
    # int32 iota: fine unless n_total > 2^31 (unrealistic for a loss batch).
    col = jax.lax.broadcasted_iota(jnp.int32, (1, tn), 1) + i * tn
    is_pos = col < batch_size
    is_valid = col < n_total

    # probabilities_graph is binary, so the two CE terms fuse into one log:
    #   pos: -log(max(p_dist, eps))
    #   neg: -log(max(1 - p_dist, eps)) * repulsion_strength
    # Upper clip at 1.0 is unnecessary: both args are <= 1 by construction.
    arg = jnp.where(is_pos, p_dist, 1.0 - p_dist)
    weight = jnp.where(is_pos, 1.0, repulsion_strength)
    ce = -jnp.log(jnp.maximum(arg, eps)) * weight
    ce = jnp.where(is_valid, ce, 0.0)                         # mask padding

    # TODO(synk): if EUP/VALU ever becomes binding, reshape to (D, G, 8, tw)
    # tiles so the post-reduction math runs on (8, tw) full-occupancy vregs.

    # Per-tile partial sum, broadcast to all 128 lanes of this tile's output
    # block (unmasked lane-dense store); the host divides the sum by 128.
    partial = jnp.sum(ce, keepdims=True)                      # (1, 1)
    out_ref[...] = jnp.broadcast_to(partial, (1, 128))


def umap_loss(embed_to_from, *, batch_size, negative_sample_rate, _a, _b,
              repulsion_strength=1.0, key=None, tn=8192):
    """Pallas implementation of UMAPLoss.forward."""
    if key is None:
        key = jax.random.PRNGKey(0)

    x = embed_to_from
    # Keep bf16 in HBM (halves kernel DMA); everything else promotes to f32.
    if x.dtype not in (jnp.dtype(jnp.bfloat16), jnp.dtype(jnp.float32)):
        x = x.astype(jnp.float32)
    two_d = x.shape[1]
    d = two_d // 2

    # --- glue (plain JAX), all in the transposed (D, .) layout -------------
    # TODO(synk): fold the repeat / permutation gather into scalar-prefetch
    # index maps instead of materializing the negative slab in HBM.
    to_t = x[:, :d].T                                          # (D, B)
    from_t = x[:, d:].T                                        # (D, B)

    pos_diff = to_t - from_t                                   # (D, B)

    neg_to_t = jnp.repeat(to_t, negative_sample_rate, axis=1)        # (D, B*nsr)
    repeat_neg_t = jnp.repeat(from_t, negative_sample_rate, axis=1)  # (D, B*nsr)
    perm = jax.random.permutation(key, repeat_neg_t.shape[1])
    neg_from_t = repeat_neg_t[:, perm]
    neg_diff = neg_to_t - neg_from_t                           # (D, B*nsr)

    n_total = int(batch_size) * (1 + int(negative_sample_rate))

    # --- tile sizing --------------------------------------------------------
    tn_req = max(128, (int(tn) // 128) * 128)
    n128 = _round_up(n_total, 128)
    tn_eff = min(tn_req, n128)
    # Ensure >= 2 tiles when there is enough data so the "parallel" grid axis
    # can split across both TensorCores on v7x.
    if tn_eff == n128 and n128 >= 256:
        tn_eff = max(128, (n128 // 2 // 128) * 128)
    n_pad = _round_up(n_total, tn_eff)
    grid = n_pad // tn_eff

    diff_all = jnp.concatenate([pos_diff, neg_diff], axis=1)   # (D, n_total)
    diff_all = jnp.pad(diff_all, ((0, 0), (0, n_pad - n_total)))  # (D, n_pad)

    kernel = functools.partial(
        _umap_loss_kernel,
        a=float(_a), b=float(_b),
        batch_size=int(batch_size),
        repulsion_strength=float(repulsion_strength),
        n_total=int(n_total), tn=int(tn_eff), eps=1e-4,
    )

    # Double-buffered input working set; only raise the scoped-VMEM limit if
    # we would exceed the smallest generation default (v5e: 16 MiB scoped).
    dbuf_bytes = 2 * d * tn_eff * diff_all.dtype.itemsize + 2 * 128 * 4
    cp_kwargs = dict(dimension_semantics=("parallel",))
    if dbuf_bytes > (12 << 20):
        cp_kwargs["vmem_limit_bytes"] = min(dbuf_bytes + (4 << 20), 48 << 20)

    partials = pl.pallas_call(
        kernel,
        out_shape=jax.ShapeDtypeStruct((1, grid * 128), jnp.float32),
        grid_spec=pltpu.PrefetchScalarGridSpec(
            num_scalar_prefetch=0,
            grid=(grid,),
            in_specs=[
                pl.BlockSpec((d, tn_eff), lambda i: (0, i)),
            ],
            out_specs=pl.BlockSpec((1, 128), lambda i: (0, i)),
        ),
        compiler_params=pltpu.CompilerParams(**cp_kwargs),
    )(diff_all)

    # Each tile wrote its partial sum to all 128 lanes -> divide by 128.
    return jnp.sum(partials) / (128.0 * n_total)


def _umap_loss_ref(embed_to_from, *, batch_size, negative_sample_rate, _a, _b,
                   repulsion_strength=1.0, key=None):
    """Pure-JAX reference mirroring the PyTorch forward (same permutation)."""
    if key is None:
        key = jax.random.PRNGKey(0)
    x = embed_to_from.astype(jnp.float32)
    d = x.shape[1] // 2
    to, frm = x[:, :d], x[:, d:]
    neg_to = jnp.repeat(to, negative_sample_rate, axis=0)
    repeat_neg = jnp.repeat(frm, negative_sample_rate, axis=0)
    perm = jax.random.permutation(key, repeat_neg.shape[0])
    neg_from = repeat_neg[perm]
    dist = jnp.concatenate([
        jnp.linalg.norm(to - frm, axis=1),
        jnp.linalg.norm(neg_to - neg_from, axis=1),
    ], axis=0)
    p_dist = 1.0 / (1.0 + _a * dist ** (2 * _b))
    p_graph = jnp.concatenate([
        jnp.ones((batch_size,), jnp.float32),
        jnp.zeros((batch_size * negative_sample_rate,), jnp.float32),
    ], axis=0)
    eps = 1e-4
    attraction = -p_graph * jnp.log(jnp.clip(p_dist, eps, 1.0))
    repellant = (-(1.0 - p_graph) * jnp.log(jnp.clip(1.0 - p_dist, eps, 1.0))
                 * repulsion_strength)
    return jnp.mean(attraction + repellant)


if __name__ == "__main__":
    # Small, deterministic example consistent with the module's forward:
    # embed_to_from has shape (batch_size, 2 * embedding_dim).
    batch_size = 8
    embedding_dim = 16
    negative_sample_rate = 3
    _a, _b = 1.576943460405378, 0.8950608781227859  # standard UMAP a/b
    repulsion_strength = 1.0

    key = jax.random.PRNGKey(0)
    data_key, perm_key = jax.random.split(key)
    embed_to_from = jax.random.normal(
        data_key, (batch_size, 2 * embedding_dim), dtype=jnp.float32)

    loss = umap_loss(
        embed_to_from,
        batch_size=batch_size,
        negative_sample_rate=negative_sample_rate,
        _a=_a, _b=_b,
        repulsion_strength=repulsion_strength,
        key=perm_key,
    )
    loss = jax.block_until_ready(loss)

    ref = _umap_loss_ref(
        embed_to_from,
        batch_size=batch_size,
        negative_sample_rate=negative_sample_rate,
        _a=_a, _b=_b,
        repulsion_strength=repulsion_strength,
        key=perm_key,
    )
    assert jnp.allclose(loss, ref, rtol=1e-4, atol=1e-5), (loss, ref)

    print("KERNEL_OK")
</pallas_src>

<mosaic_0001>
module attributes {stable_mosaic.version = 11 : i64} {
  func.func @_umap_loss_kernel(%arg0: i32, %arg1: memref<16x128xf32, #tpu.memory_space<vmem>>, %arg2: memref<1x128xf32, #tpu.memory_space<vmem>>) attributes {dimension_semantics = [#tpu.dimension_semantics<parallel>], iteration_bounds = array<i64: 1>, scalar_prefetch = 0 : i64, scratch_operands = 0 : i64, tpu.core_type = #tpu.core_type<tc>, window_params = [{transform_indices = @transform_0, window_bounds = array<i64: 16, 128>}, {transform_indices = @transform_1, window_bounds = array<i64: 1, 128>}]} {
    %c0 = arith.constant 0 : index
    %c0_0 = arith.constant 0 : index
    %0 = vector.load %arg1[%c0, %c0_0] : memref<16x128xf32, #tpu.memory_space<vmem>>, vector<16x128xf32>
    %1 = arith.mulf %0, %0 : vector<16x128xf32>
    %cst = arith.constant dense<0.000000e+00> : vector<128xf32>
    %2 = vector.multi_reduction <add>, %1, %cst [0] : vector<16x128xf32> to vector<128xf32>
    %3 = vector.shape_cast %2 : vector<128xf32> to vector<1x128xf32>
    %cst_1 = arith.constant 1.000000e-30 : f32
    %4 = vector.broadcast %cst_1 : f32 to vector<1x128xf32>
    %5 = arith.maximumf %3, %4 : vector<1x128xf32>
    %6 = math.log %5 : vector<1x128xf32>
    %cst_2 = arith.constant 0.895060896 : f32
    %7 = vector.broadcast %cst_2 : f32 to vector<1x128xf32>
    %8 = arith.mulf %7, %6 : vector<1x128xf32>
    %9 = math.exp %8 : vector<1x128xf32>
    %cst_3 = arith.constant 0.000000e+00 : f32
    %10 = vector.broadcast %cst_3 : f32 to vector<1x128xf32>
    %11 = arith.cmpf ogt, %3, %10 : vector<1x128xf32>
    %cst_4 = arith.constant 0.000000e+00 : f32
    %12 = vector.broadcast %cst_4 : f32 to vector<1x128xf32>
    %13 = arith.select %11, %9, %12 : vector<1x128xi1>, vector<1x128xf32>
    %cst_5 = arith.constant 1.57694352 : f32
    %14 = vector.broadcast %cst_5 : f32 to vector<1x128xf32>
    %15 = arith.mulf %14, %13 : vector<1x128xf32>
    %cst_6 = arith.constant 1.000000e+00 : f32
    %16 = vector.broadcast %cst_6 : f32 to vector<1x128xf32>
    %17 = arith.addf %16, %15 : vector<1x128xf32>
    %cst_7 = arith.constant 1.000000e+00 : f32
    %18 = vector.broadcast %cst_7 : f32 to vector<1x128xf32>
    %19 = arith.divf %18, %17 : vector<1x128xf32>
    %20 = tpu.iota {dimensions = array<i32: 1>} : vector<1x128xi32>
    %c128_i32 = arith.constant 128 : i32
    %21 = arith.muli %arg0, %c128_i32 : i32
    %22 = vector.broadcast %21 : i32 to vector<1x128xi32>
    %23 = arith.addi %20, %22 : vector<1x128xi32>
    %c8_i32 = arith.constant 8 : i32
    %24 = vector.broadcast %c8_i32 : i32 to vector<1x128xi32>
    %25 = arith.cmpi slt, %23, %24 : vector<1x128xi32>
    %c32_i32 = arith.constant 32 : i32
    %26 = vector.broadcast %c32_i32 : i32 to vector<1x128xi32>
    %27 = arith.cmpi slt, %23, %26 : vector<1x128xi32>
    %cst_8 = arith.constant 1.000000e+00 : f32
    %28 = vector.broadcast %cst_8 : f32 to vector<1x128xf32>
    %29 = arith.subf %28, %19 : vector<1x128xf32>
    %30 = arith.select %25, %19, %29 : vector<1x128xi1>, vector<1x128xf32>
    %cst_9 = arith.constant 1.000000e+00 : f32
    %cst_10 = arith.constant 1.000000e+00 : f32
    %31 = vector.broadcast %cst_9 : f32 to vector<1x128xf32>
    %32 = vector.broadcast %cst_10 : f32 to vector<1x128xf32>
    %33 = arith.select %25, %31, %32 : vector<1x128xi1>, vector<1x128xf32>
    %cst_11 = arith.constant 9.99999974E-5 : f32
    %34 = vector.broadcast %cst_11 : f32 to vector<1x128xf32>
    %35 = arith.maximumf %30, %34 : vector<1x128xf32>
    %36 = math.log %35 : vector<1x128xf32>
    %cst_12 = arith.constant 0.000000e+00 : f32
    %37 = vector.broadcast %cst_12 : f32 to vector<1x128xf32>
    %38 = arith.subf %37, %36 : vector<1x128xf32>
    %39 = arith.mulf %38, %33 : vector<1x128xf32>
    %cst_13 = arith.constant 0.000000e+00 : f32
    %40 = vector.broadcast %cst_13 : f32 to vector<1x128xf32>
    %41 = arith.select %27, %39, %40 : vector<1x128xi1>, vector<1x128xf32>
    %42 = vector.shape_cast %41 : vector<1x128xf32> to vector<1x1x128xf32>
    %cst_14 = arith.constant dense<0.000000e+00> : vector<1xf32>
    %43 = vector.multi_reduction <add>, %42, %cst_14 [1, 2] : vector<1x1x128xf32> to vector<1xf32>
    %44 = vector.shape_cast %43 : vector<1xf32> to vector<1x1x1xf32>
    %45 = vector.extract %44[0, 0, 0] : f32 from vector<1x1x1xf32>
    %46 = vector.broadcast %45 : f32 to vector<1x1xf32>
    %47 = vector.shape_cast %46 : vector<1x1xf32> to vector<1x1xf32>
    %48 = vector.broadcast %47 : vector<1x1xf32> to vector<1x128xf32>
    %c0_15 = arith.constant 0 : index
    %c0_16 = arith.constant 0 : index
    %49 = vector.load %arg2[%c0_15, %c0_16] : memref<1x128xf32, #tpu.memory_space<vmem>>, vector<1x128xf32>
    tpu.vector_store %arg2[%c0_15, %c0_16], %48 {strides = array<i32>} : memref<1x128xf32, #tpu.memory_space<vmem>>, vector<1x128xf32>,
    return
  }
  func.func @transform_0(%arg0: i32) -> (i32, i32) {
    %c0_i32 = arith.constant 0 : i32
    %c0_i32_0 = arith.constant 0 : i32
    return %c0_i32, %arg0 : i32, i32
  }
  func.func @transform_1(%arg0: i32) -> (i32, i32) {
    %c0_i32 = arith.constant 0 : i32
    %c0_i32_0 = arith.constant 0 : i32
    return %c0_i32, %arg0 : i32, i32
  }
}

</mosaic_0001>

<llo_original>
// kernel: tpu_custom_call.1
$region0: #{tpu_custom_call.1}
  #allocation0 [shape = 'u32[]', space=smem, size = 0x4, offset = 0x4, fixed_abs, tag = 'smem constant byte address 0x4 - core index']
  #allocation1 [shape = 'u32[144,128]{1,0:T(1,128)}', space=vmem, size = 0x12000, scoped, tag = 'internal scratch']
  %s0 = inlined_call_operand.hbm [shape: f32[16,128], index: 0, kind: input, shape index: {}]
  %s1 = inlined_call_operand.hbm [shape: f32[1,128], index: 1, kind: output, shape index: {}]
  %s2 = sld [smem:[#allocation0]]
  $region18: #{tpu_custom_call.1} parent=0
    _
  %s4 = ssub.s32 1, %s2
  %s5 = scalar_select 0, %s4, %s2
  $region1: #{tpu_custom_call.1} parent=0
    #allocation2 [shape = 'u8[8192]{0}', space=vmem, size = 0x2000, scoped, tag = 'input window, operand 0, single buffered']
    #allocation3 [shape = 's32[1]{0}', space=sflag, size = 0x4, scoped, tag = 'scoped memory for tpu_custom_call.1']
    #allocation4 [shape = 's32[1]{0}', space=sflag, size = 0x4, scoped, tag = 'scoped memory for tpu_custom_call.1']
    #allocation5 [shape = 'u8[512]{0}', space=vmem, size = 0x400, scoped, tag = 'output window, operand 0, single buffered']
    %6 = vsyncpa [#allocation3], 0
    %7 = vsyncpa [#allocation4], 0
    // Predicated region
    $region2: #{tpu_custom_call.1} parent=1 // pred_check
      _
    $region3: #{tpu_custom_call.1} parent=1 // pred_check_branch
      %9 = sbr.rel (0) target = $region5
    $region4: #{tpu_custom_call.1} parent=1 // pred_region
      %s11 = ssub.s32 256, 256
      %12 = vsyncadd [#allocation3], %s11
      %s13 = sshll.u32 [#allocation2], 4
      %s14 = int_to_ptr.vmem [resolvable:$true] %s13
      %19 = dma.hbm_to_vmem [thread:$0]  %s0, 256, %s14, [#allocation3], 128, 128, 8
    $region5: #{tpu_custom_call.1} parent=1 // pred_fallthru
      _
    // Predicated region
    $region6: #{tpu_custom_call.1} parent=1 // pred_check
      _
    $region7: #{tpu_custom_call.1} parent=1 // pred_check_branch
      %21 = sbr.rel (0) target = $region9
    $region8: #{tpu_custom_call.1} parent=1 // pred_region
      %22 = dma.done [#allocation3], 256
    $region9: #{tpu_custom_call.1} parent=1 // pred_fallthru
      _
    %v23 = vld [vmem:[#allocation2] sm:$0xff]
    %v24 = vld [vmem:[#allocation2 + $0x8] sm:$0xff]
    %v25 = vmul.f32 %v23, %v23
    %v26 = vmul.f32 %v24, %v24
    %v27 = vadd.f32 %v25, %v26
    %v28 = vrot.slane %v27, 4
    %v29 = vadd.f32 %v27, %v28
    %v30 = vrot.slane %v29, 2
    %v31 = vadd.f32 %v29, %v30
    %v32 = vrot.slane %v31, 1
    %v33 = vadd.f32 %v31, %v32
    %v34 = vmax.f32 %v33, 1e-30
    %v35 = vlog2.pop %v34
    %v36 = vmul.f32 %v35, 0.6931472
    %v37 = vmul.f32 %v36, 0.8950609
    %v38 = vmul.f32 %v37, 1.442695
    %v39 = vpow.pop %v38
    %vm40 = vcmp.gt.f32.partialorder %v33, 0.0
    %v41 = vsel %vm40, %v39, 0.0
    %v42 = vmul.f32 %v41, 1.5769435
    %v43 = vadd.f32 %v42, 1.0
    %v44 = vrcp.pop %v43
    %v45 = vmul.f32 1.0, %v44
    %v46 = vlaneseq
    %v47 = vand.u32 %v46, 127
    %s48 = smul.u32 0, 128
    %v49 = vstv %s48
    %v50 = vadd.s32 %v47, %v49
    %vm51 = vcmp.lt.s32.totalorder %v50, 8
    %vm52 = vcmp.lt.s32.totalorder %v50, 32
    %v53 = vsub.f32 1.0, %v45
    %v54 = vsel %vm51, %v45, %v53
    %v55 = vmax.f32 %v54, 0.0001
    %v56 = vlog2.pop %v55
    %v57 = vmul.f32 %v56, 0.6931472
    %v58 = vsub.f32 0.0, %v57
    %v59 = vsel %vm52, %v58, 0.0
    %vm60 = vcmask 1040384
    %v61 = vsel %vm60, %v59, 0.0
    %62 = vadd.xlane.f32.xlu0 %v61
    %v63 = vpop.xlane.xlu0 %62
    %v64 = vrot.slane %v63, 4
    %v65 = vadd.f32 %v63, %v64
    %v66 = vrot.slane %v65, 2
    %v67 = vadd.f32 %v65, %v66
    %v68 = vrot.slane %v67, 1
    %v69 = vadd.f32 %v67, %v68
    %s70 = vtos %v69
    %v71 = vstv %s70
    %72 = vst [vmem:[#allocation5] sm:$0x1] %v71
    // Predicated region
    $region10: #{tpu_custom_call.1} parent=1 // pred_check
      _
    $region11: #{tpu_custom_call.1} parent=1 // pred_check_branch
      %74 = sbr.rel (0) target = $region13
    $region12: #{tpu_custom_call.1} parent=1 // pred_region
      %s76 = ssub.s32 16, 16
      %77 = vsyncadd [#allocation4], %s76
      %s79 = sshll.u32 [#allocation5], 4
      %s80 = int_to_ptr.vmem [resolvable:$true] %s79
      %82 = dma.vmem_to_hbm [thread:$0]  %s80, 16, %s1, [#allocation4]
    $region13: #{tpu_custom_call.1} parent=1 // pred_fallthru
      _
    // Predicated region
    $region14: #{tpu_custom_call.1} parent=1 // pred_check
      _
    $region15: #{tpu_custom_call.1} parent=1 // pred_check_branch
      %84 = sbr.rel (0) target = $region17
    $region16: #{tpu_custom_call.1} parent=1 // pred_region
      %85 = dma.done [#allocation4], 16
    $region17: #{tpu_custom_call.1} parent=1 // pred_fallthru
      _
    %86 = vsyncpa [#allocation3], 1
    %87 = vsyncpa [#allocation4], 1

</llo_original>
